<compile_context>
chip_gen: v7x
topology: tpu7x:2x2x1
jax: 0.10.0
libtpu: 0.0.40
codegen_flags: <defaults>
</compile_context>

<pallas_src>
import functools
import math
import warnings

import jax
import jax.numpy as jnp
import numpy as np
from jax.experimental import pallas as pl
from jax.experimental.pallas import tpu as pltpu

_LANE = 128


def _lspcheck_kernel(w_ref, out_ref, flag_ref, done_ref, *, min_distance, n_iter):
    """w_ref/out_ref: (M+1, TILE_S, 128) f32 VMEM blocks.

    flag_ref: (1, 1, 128) i32 VMEM per-tile instability flags (per lane).
    done_ref: (1,) i32 SMEM scratch implementing the per-tile early break.
    """
    M1 = w_ref.shape[0]
    M = M1 - 1
    PI = jnp.float32(math.pi)
    md = jnp.float32(min_distance)
    hi = jnp.float32(math.pi - min_distance)
    eps = jnp.float32(min_distance - 1e-16)

    w = w_ref[...]                                            # (M1, S, 128)

    # --- instability flag (diagnostic, computed on the *input* block). ---
    # Note: the reference checks the FULL w (including the gain row) against
    # (0, pi), so we do the same here.
    bad = ((w <= 0.0) | (w >= PI)).astype(jnp.float32)        # (M1, S, 128)
    score = jnp.max(jnp.max(bad, axis=0), axis=0)             # (128,)
    if M >= 2:
        d0 = ((w[2:] - w[1:-1]) <= 0.0).astype(jnp.float32)   # (M-1, S, 128)
        score = jnp.maximum(score, jnp.max(jnp.max(d0, axis=0), axis=0))
    flag_ref[...] = (score > 0.0).astype(jnp.int32).reshape(flag_ref.shape)

    if M == 0 or n_iter == 0:
        out_ref[...] = w
        return

    out_ref[0] = w[0]                 # gain K passes through unchanged

    def sweep(read_row, compute_converged):
        # One full inner sweep over adjacent LSP pairs, writing final values
        # (with the end-of-iteration clip fused into the store) to out_ref[1:].
        a = read_row(1)               # w1[0]
        prev_clip = None
        ok = None
        for m in range(M - 1):
            b = read_row(m + 2)       # w1[m+1], original/previous-iter value
            step = 0.5 * jnp.maximum(md - (b - a), 0.0)
            new_clip = jnp.clip(a - step, md, hi)
            out_ref[m + 1] = new_clip
            if compute_converged and prev_clip is not None:
                cond = (new_clip - prev_clip) >= eps
                ok = cond if ok is None else (ok & cond)
            prev_clip = new_clip
            a = b + step              # carry updated w1[m+1] in registers
        last_clip = jnp.clip(a, md, hi)
        out_ref[M] = last_clip
        if not compute_converged:
            return None
        if prev_clip is not None:
            cond = (last_clip - prev_clip) >= eps
            ok = cond if ok is None else (ok & cond)
        if ok is None:                # M == 1: no adjacent pairs -> converged
            return jnp.asarray(True)
        return jnp.all(ok)

    rd_first = lambda r: w_ref[r]     # first iteration reads the input rows
    rd_rest = lambda r: out_ref[r]    # later iterations read in-place results

    if n_iter <= 8:
        # Fully unrolled outer loop; convergence check skipped on the last
        # iteration (and entirely when n_iter == 1).
        conv = sweep(rd_first, n_iter > 1)
        if n_iter > 1:
            done_ref[0] = conv.astype(jnp.int32)
            for it in range(1, n_iter):
                is_last = it == n_iter - 1

                @pl.when(done_ref[0] == 0)
                def _body(is_last=is_last):
                    c = sweep(rd_rest, not is_last)
                    if not is_last:
                        done_ref[0] = c.astype(jnp.int32)
    else:
        conv = sweep(rd_first, True)
        done_ref[0] = conv.astype(jnp.int32)

        @pl.loop(0, n_iter - 1)
        def _(_it):
            @pl.when(done_ref[0] == 0)
            def _():
                c = sweep(rd_rest, True)
                done_ref[0] = c.astype(jnp.int32)


def _choose_tile_s(M1, s_needed, max_tile_s=None):
    # ~1 MiB f32 per block, tile_s a multiple of 8 in [8, 256], no bigger
    # than the (rounded-up) batch actually needs.
    ts = (1 << 20) // (M1 * _LANE * 4)
    ts = max(8, min(256, (ts // 8) * 8))
    ts = min(ts, ((s_needed + 7) // 8) * 8)
    if max_tile_s is not None:
        ts = min(ts, max(8, (max_tile_s // 8) * 8))
    return max(8, ts)


def lsp_check(w, lsp_order, rate=0.0, n_iter=1, warn_type="warn", max_tile_s=None):
    """JAX/Pallas equivalent of LineSpectralPairsStabilityCheck.forward."""
    assert 0 <= lsp_order
    assert 0.0 <= rate <= 1.0
    assert 0 <= n_iter
    assert warn_type in ("ignore", "warn", "exit")
    assert w.shape[-1] == lsp_order + 1, "dimension of LSP is wrong"

    M1 = lsp_order + 1
    min_distance = rate * math.pi / (lsp_order + 1)
    batch_shape = w.shape[:-1]
    B = int(np.prod(batch_shape)) if len(batch_shape) else 1

    s_needed = max(1, -(-B // _LANE))
    tile_s = _choose_tile_s(M1, s_needed, max_tile_s)
    s_pad = ((s_needed + tile_s - 1) // tile_s) * tile_s
    b_pad = s_pad * _LANE
    num_tiles = s_pad // tile_s

    wf = jnp.asarray(w, jnp.float32).reshape(B, M1)
    if b_pad > B:
        # Stable, strictly-increasing in-(0,pi) filler so padding never trips
        # the instability flag nor delays the per-tile early break much.
        filler = jnp.arange(1, M1 + 1, dtype=jnp.float32) * jnp.float32(
            math.pi / (M1 + 1)
        )
        wf = jnp.concatenate(
            [wf, jnp.broadcast_to(filler, (b_pad - B, M1))], axis=0
        )
    w_t = wf.T.reshape(M1, s_pad, _LANE)   # (M+1, S, 128) kernel layout

    kernel = functools.partial(
        _lspcheck_kernel, min_distance=min_distance, n_iter=n_iter
    )
    out_t, flags = pl.pallas_call(
        kernel,
        grid=(num_tiles,),
        out_shape=(
            jax.ShapeDtypeStruct((M1, s_pad, _LANE), jnp.float32),
            jax.ShapeDtypeStruct((num_tiles, 1, _LANE), jnp.int32),
        ),
        in_specs=[pl.BlockSpec((M1, tile_s, _LANE), lambda i: (0, i, 0))],
        out_specs=(
            pl.BlockSpec((M1, tile_s, _LANE), lambda i: (0, i, 0)),
            pl.BlockSpec((1, 1, _LANE), lambda i: (i, 0, 0)),
        ),
        scratch_shapes=[pltpu.SMEM((1,), jnp.int32)],
        compiler_params=pltpu.CompilerParams(
            dimension_semantics=("parallel",),
        ),
    )(w_t)

    out = out_t.reshape(M1, b_pad).T[:B].reshape(*batch_shape, M1)

    # Warning semantics are host-side Python; only sync when actually needed.
    if warn_type != "ignore":
        unstable = bool(jax.device_get(jnp.any(flags != 0)))
        if unstable:
            if warn_type == "warn":
                warnings.warn("Detected unstable LSP coefficients.")
            else:  # 'exit'
                raise RuntimeError("Detected unstable LSP coefficients.")
    return out


def _ref_lsp_check(w, lsp_order, rate, n_iter):
    """Pure NumPy reference mirroring the PyTorch _forward (float32)."""
    w = np.asarray(w, np.float32)
    md_py = rate * math.pi / (lsp_order + 1)
    md = np.float32(md_py)
    hi = np.float32(math.pi - md_py)
    K = w[..., :1].copy()
    w1 = w[..., 1:].copy()
    for _ in range(n_iter):
        for m in range(w1.shape[-1] - 1):
            n = m + 1
            distance = w1[..., n] - w1[..., m]
            step = np.float32(0.5) * np.maximum(md - distance, np.float32(0.0))
            w1[..., m] -= step
            w1[..., n] += step
        w1 = np.clip(w1, md, hi)
        d = np.diff(w1, axis=-1)
        if np.all(md - 1e-16 <= d):
            break
    return np.concatenate([K, w1], axis=-1)


if __name__ == "__main__":
    # Test 1: small batch; spacing violations force min-distance adjustments.
    lsp_order = 7                      # M = 7 -> feature dim M+1 = 8
    rate = 0.2
    n_iter = 3
    key = jax.random.PRNGKey(0)
    raw = jax.random.uniform(
        key, (2, 3, lsp_order + 1), minval=0.05, maxval=math.pi - 0.05,
        dtype=jnp.float32,
    )
    w1 = jnp.sort(raw, axis=-1)        # valid increasing LSPs in (0, pi)
    out1 = jax.block_until_ready(
        lsp_check(w1, lsp_order, rate=rate, n_iter=n_iter, warn_type="warn")
    )
    ref1 = _ref_lsp_check(np.asarray(w1), lsp_order, rate, n_iter)
    np.testing.assert_allclose(np.asarray(out1), ref1, rtol=1e-5, atol=1e-5)

    # Test 2: docstring example (unstable input), flag path, warn_type='ignore'.
    w2 = jnp.array([0.0, 0.0, 1.0], dtype=jnp.float32) * jnp.float32(math.pi)
    out2 = jax.block_until_ready(
        lsp_check(w2, 2, rate=0.01, n_iter=1, warn_type="ignore")
    )
    ref2 = _ref_lsp_check(np.asarray(w2), 2, 0.01, 1)
    np.testing.assert_allclose(np.asarray(out2), ref2, rtol=1e-5, atol=1e-5)

    # Test 3: batch spanning multiple grid tiles (tile size forced small).
    raw3 = jax.random.uniform(
        jax.random.PRNGKey(0), (5, 300, lsp_order + 1), minval=0.05,
        maxval=math.pi - 0.05, dtype=jnp.float32,
    )
    w3 = jnp.sort(raw3, axis=-1)
    out3 = jax.block_until_ready(
        lsp_check(w3, lsp_order, rate=0.1, n_iter=2, warn_type="ignore",
                  max_tile_s=8)
    )
    ref3 = _ref_lsp_check(np.asarray(w3), lsp_order, 0.1, 2)
    np.testing.assert_allclose(np.asarray(out3), ref3, rtol=1e-5, atol=1e-5)

    print("KERNEL_OK")
</pallas_src>

<mosaic_0001>
module attributes {stable_mosaic.version = 11 : i64} {
  func.func @_lspcheck_kernel(%arg0: i32, %arg1: memref<8x8x128xf32, #tpu.memory_space<vmem>>, %arg2: memref<8x8x128xf32, #tpu.memory_space<vmem>>, %arg3: memref<1x1x128xi32, #tpu.memory_space<vmem>>, %arg4: memref<1xi32, #tpu.memory_space<smem>>) attributes {dimension_semantics = [#tpu.dimension_semantics<parallel>], iteration_bounds = array<i64: 1>, scalar_prefetch = 0 : i64, scratch_operands = 1 : i64, tpu.core_type = #tpu.core_type<tc>, window_params = [{transform_indices = @transform_0, window_bounds = array<i64: 8, 8, 128>}, {transform_indices = @transform_1, window_bounds = array<i64: 8, 8, 128>}, {transform_indices = @transform_2, window_bounds = array<i64: 1, 1, 128>}]} {
    %c0 = arith.constant 0 : index
    %c0_0 = arith.constant 0 : index
    %c0_1 = arith.constant 0 : index
    %0 = vector.load %arg1[%c0, %c0_0, %c0_1] : memref<8x8x128xf32, #tpu.memory_space<vmem>>, vector<8x8x128xf32>
    %cst = arith.constant 0.000000e+00 : f32
    %1 = vector.broadcast %cst : f32 to vector<8x8x128xf32>
    %2 = arith.cmpf ole, %0, %1 : vector<8x8x128xf32>
    %cst_2 = arith.constant 3.14159274 : f32
    %3 = vector.broadcast %cst_2 : f32 to vector<8x8x128xf32>
    %4 = arith.cmpf oge, %0, %3 : vector<8x8x128xf32>
    %5 = arith.ori %2, %4 : vector<8x8x128xi1>
    %6 = arith.extui %5 : vector<8x8x128xi1> to vector<8x8x128xi32>
    %7 = arith.sitofp %6 : vector<8x8x128xi32> to vector<8x8x128xf32>
    %cst_3 = arith.constant dense<0xFF800000> : vector<8x128xf32>
    %8 = vector.multi_reduction <maximumf>, %7, %cst_3 [0] : vector<8x8x128xf32> to vector<8x128xf32>
    %cst_4 = arith.constant dense<0xFF800000> : vector<128xf32>
    %9 = vector.multi_reduction <maximumf>, %8, %cst_4 [0] : vector<8x128xf32> to vector<128xf32>
    %10 = vector.extract_strided_slice %0 {offsets = [2, 0, 0], sizes = [6, 8, 128], strides = [1, 1, 1]} : vector<8x8x128xf32> to vector<6x8x128xf32>
    %11 = vector.extract_strided_slice %0 {offsets = [1, 0, 0], sizes = [6, 8, 128], strides = [1, 1, 1]} : vector<8x8x128xf32> to vector<6x8x128xf32>
    %12 = arith.subf %10, %11 : vector<6x8x128xf32>
    %cst_5 = arith.constant 0.000000e+00 : f32
    %13 = vector.broadcast %cst_5 : f32 to vector<6x8x128xf32>
    %14 = arith.cmpf ole, %12, %13 : vector<6x8x128xf32>
    %15 = arith.extui %14 : vector<6x8x128xi1> to vector<6x8x128xi32>
    %16 = arith.sitofp %15 : vector<6x8x128xi32> to vector<6x8x128xf32>
    %cst_6 = arith.constant dense<0xFF800000> : vector<8x128xf32>
    %17 = vector.multi_reduction <maximumf>, %16, %cst_6 [0] : vector<6x8x128xf32> to vector<8x128xf32>
    %cst_7 = arith.constant dense<0xFF800000> : vector<128xf32>
    %18 = vector.multi_reduction <maximumf>, %17, %cst_7 [0] : vector<8x128xf32> to vector<128xf32>
    %19 = arith.maximumf %9, %18 : vector<128xf32>
    %cst_8 = arith.constant 0.000000e+00 : f32
    %20 = vector.broadcast %cst_8 : f32 to vector<128xf32>
    %21 = arith.cmpf ogt, %19, %20 : vector<128xf32>
    %22 = arith.extui %21 : vector<128xi1> to vector<128xi32>
    %23 = vector.shape_cast %22 : vector<128xi32> to vector<1x1x128xi32>
    %c0_9 = arith.constant 0 : index
    %c0_10 = arith.constant 0 : index
    %c0_11 = arith.constant 0 : index
    %24 = vector.load %arg3[%c0_9, %c0_10, %c0_11] : memref<1x1x128xi32, #tpu.memory_space<vmem>>, vector<1x1x128xi32>
    tpu.vector_store %arg3[%c0_9, %c0_10, %c0_11], %23 {strides = array<i32>} : memref<1x1x128xi32, #tpu.memory_space<vmem>>, vector<1x1x128xi32>,
    %25 = vector.extract_strided_slice %0 {offsets = [0, 0, 0], sizes = [1, 8, 128], strides = [1, 1, 1]} : vector<8x8x128xf32> to vector<1x8x128xf32>
    %26 = vector.shape_cast %25 : vector<1x8x128xf32> to vector<8x128xf32>
    %c0_12 = arith.constant 0 : index
    %c0_13 = arith.constant 0 : index
    %c0_14 = arith.constant 0 : index
    %27 = vector.load %arg2[%c0_12, %c0_13, %c0_14] : memref<8x8x128xf32, #tpu.memory_space<vmem>>, vector<1x8x128xf32>
    %28 = vector.shape_cast %27 : vector<1x8x128xf32> to vector<8x128xf32>
    %29 = vector.shape_cast %26 : vector<8x128xf32> to vector<1x8x128xf32>
    tpu.vector_store %arg2[%c0_12, %c0_13, %c0_14], %29 {strides = array<i32>} : memref<8x8x128xf32, #tpu.memory_space<vmem>>, vector<1x8x128xf32>,
    %c1 = arith.constant 1 : index
    %c0_15 = arith.constant 0 : index
    %c0_16 = arith.constant 0 : index
    %30 = vector.load %arg1[%c1, %c0_15, %c0_16] : memref<8x8x128xf32, #tpu.memory_space<vmem>>, vector<1x8x128xf32>
    %31 = vector.shape_cast %30 : vector<1x8x128xf32> to vector<8x128xf32>
    %c2 = arith.constant 2 : index
    %c0_17 = arith.constant 0 : index
    %c0_18 = arith.constant 0 : index
    %32 = vector.load %arg1[%c2, %c0_17, %c0_18] : memref<8x8x128xf32, #tpu.memory_space<vmem>>, vector<1x8x128xf32>
    %33 = vector.shape_cast %32 : vector<1x8x128xf32> to vector<8x128xf32>
    %34 = arith.subf %33, %31 : vector<8x128xf32>
    %cst_19 = arith.constant 0.0785398185 : f32
    %35 = vector.broadcast %cst_19 : f32 to vector<8x128xf32>
    %36 = arith.subf %35, %34 : vector<8x128xf32>
    %cst_20 = arith.constant 0.000000e+00 : f32
    %37 = vector.broadcast %cst_20 : f32 to vector<8x128xf32>
    %38 = arith.maximumf %36, %37 : vector<8x128xf32>
    %cst_21 = arith.constant 5.000000e-01 : f32
    %39 = vector.broadcast %cst_21 : f32 to vector<8x128xf32>
    %40 = arith.mulf %39, %38 : vector<8x128xf32>
    %41 = arith.subf %31, %40 : vector<8x128xf32>
    %cst_22 = arith.constant 0.0785398185 : f32
    %cst_23 = arith.constant 3.06305289 : f32
    %42 = vector.broadcast %cst_22 : f32 to vector<8x128xf32>
    %43 = arith.maximumf %42, %41 : vector<8x128xf32>
    %44 = vector.broadcast %cst_23 : f32 to vector<8x128xf32>
    %45 = arith.minimumf %44, %43 : vector<8x128xf32>
    %c1_24 = arith.constant 1 : index
    %c0_25 = arith.constant 0 : index
    %c0_26 = arith.constant 0 : index
    %46 = vector.load %arg2[%c1_24, %c0_25, %c0_26] : memref<8x8x128xf32, #tpu.memory_space<vmem>>, vector<1x8x128xf32>
    %47 = vector.shape_cast %46 : vector<1x8x128xf32> to vector<8x128xf32>
    %48 = vector.shape_cast %45 : vector<8x128xf32> to vector<1x8x128xf32>
    tpu.vector_store %arg2[%c1_24, %c0_25, %c0_26], %48 {strides = array<i32>} : memref<8x8x128xf32, #tpu.memory_space<vmem>>, vector<1x8x128xf32>,
    %49 = arith.addf %33, %40 : vector<8x128xf32>
    %c3 = arith.constant 3 : index
    %c0_27 = arith.constant 0 : index
    %c0_28 = arith.constant 0 : index
    %50 = vector.load %arg1[%c3, %c0_27, %c0_28] : memref<8x8x128xf32, #tpu.memory_space<vmem>>, vector<1x8x128xf32>
    %51 = vector.shape_cast %50 : vector<1x8x128xf32> to vector<8x128xf32>
    %52 = arith.subf %51, %49 : vector<8x128xf32>
    %cst_29 = arith.constant 0.0785398185 : f32
    %53 = vector.broadcast %cst_29 : f32 to vector<8x128xf32>
    %54 = arith.subf %53, %52 : vector<8x128xf32>
    %cst_30 = arith.constant 0.000000e+00 : f32
    %55 = vector.broadcast %cst_30 : f32 to vector<8x128xf32>
    %56 = arith.maximumf %54, %55 : vector<8x128xf32>
    %cst_31 = arith.constant 5.000000e-01 : f32
    %57 = vector.broadcast %cst_31 : f32 to vector<8x128xf32>
    %58 = arith.mulf %57, %56 : vector<8x128xf32>
    %59 = arith.subf %49, %58 : vector<8x128xf32>
    %cst_32 = arith.constant 0.0785398185 : f32
    %cst_33 = arith.constant 3.06305289 : f32
    %60 = vector.broadcast %cst_32 : f32 to vector<8x128xf32>
    %61 = arith.maximumf %60, %59 : vector<8x128xf32>
    %62 = vector.broadcast %cst_33 : f32 to vector<8x128xf32>
    %63 = arith.minimumf %62, %61 : vector<8x128xf32>
    %c2_34 = arith.constant 2 : index
    %c0_35 = arith.constant 0 : index
    %c0_36 = arith.constant 0 : index
    %64 = vector.load %arg2[%c2_34, %c0_35, %c0_36] : memref<8x8x128xf32, #tpu.memory_space<vmem>>, vector<1x8x128xf32>
    %65 = vector.shape_cast %64 : vector<1x8x128xf32> to vector<8x128xf32>
    %66 = vector.shape_cast %63 : vector<8x128xf32> to vector<1x8x128xf32>
    tpu.vector_store %arg2[%c2_34, %c0_35, %c0_36], %66 {strides = array<i32>} : memref<8x8x128xf32, #tpu.memory_space<vmem>>, vector<1x8x128xf32>,
    %67 = arith.subf %63, %45 : vector<8x128xf32>
    %cst_37 = arith.constant 0.0785398185 : f32
    %68 = vector.broadcast %cst_37 : f32 to vector<8x128xf32>
    %69 = arith.cmpf oge, %67, %68 : vector<8x128xf32>
    %70 = arith.addf %51, %58 : vector<8x128xf32>
    %c4 = arith.constant 4 : index
    %c0_38 = arith.constant 0 : index
    %c0_39 = arith.constant 0 : index
    %71 = vector.load %arg1[%c4, %c0_38, %c0_39] : memref<8x8x128xf32, #tpu.memory_space<vmem>>, vector<1x8x128xf32>
    %72 = vector.shape_cast %71 : vector<1x8x128xf32> to vector<8x128xf32>
    %73 = arith.subf %72, %70 : vector<8x128xf32>
    %cst_40 = arith.constant 0.0785398185 : f32
    %74 = vector.broadcast %cst_40 : f32 to vector<8x128xf32>
    %75 = arith.subf %74, %73 : vector<8x128xf32>
    %cst_41 = arith.constant 0.000000e+00 : f32
    %76 = vector.broadcast %cst_41 : f32 to vector<8x128xf32>
    %77 = arith.maximumf %75, %76 : vector<8x128xf32>
    %cst_42 = arith.constant 5.000000e-01 : f32
    %78 = vector.broadcast %cst_42 : f32 to vector<8x128xf32>
    %79 = arith.mulf %78, %77 : vector<8x128xf32>
    %80 = arith.subf %70, %79 : vector<8x128xf32>
    %cst_43 = arith.constant 0.0785398185 : f32
    %cst_44 = arith.constant 3.06305289 : f32
    %81 = vector.broadcast %cst_43 : f32 to vector<8x128xf32>
    %82 = arith.maximumf %81, %80 : vector<8x128xf32>
    %83 = vector.broadcast %cst_44 : f32 to vector<8x128xf32>
    %84 = arith.minimumf %83, %82 : vector<8x128xf32>
    %c3_45 = arith.constant 3 : index
    %c0_46 = arith.constant 0 : index
    %c0_47 = arith.constant 0 : index
    %85 = vector.load %arg2[%c3_45, %c0_46, %c0_47] : memref<8x8x128xf32, #tpu.memory_space<vmem>>, vector<1x8x128xf32>
    %86 = vector.shape_cast %85 : vector<1x8x128xf32> to vector<8x128xf32>
    %87 = vector.shape_cast %84 : vector<8x128xf32> to vector<1x8x128xf32>
    tpu.vector_store %arg2[%c3_45, %c0_46, %c0_47], %87 {strides = array<i32>} : memref<8x8x128xf32, #tpu.memory_space<vmem>>, vector<1x8x128xf32>,
    %88 = arith.subf %84, %63 : vector<8x128xf32>
    %cst_48 = arith.constant 0.0785398185 : f32
    %89 = vector.broadcast %cst_48 : f32 to vector<8x128xf32>
    %90 = arith.cmpf oge, %88, %89 : vector<8x128xf32>
    %91 = arith.andi %69, %90 : vector<8x128xi1>
    %92 = arith.addf %72, %79 : vector<8x128xf32>
    %c5 = arith.constant 5 : index
    %c0_49 = arith.constant 0 : index
    %c0_50 = arith.constant 0 : index
    %93 = vector.load %arg1[%c5, %c0_49, %c0_50] : memref<8x8x128xf32, #tpu.memory_space<vmem>>, vector<1x8x128xf32>
    %94 = vector.shape_cast %93 : vector<1x8x128xf32> to vector<8x128xf32>
    %95 = arith.subf %94, %92 : vector<8x128xf32>
    %cst_51 = arith.constant 0.0785398185 : f32
    %96 = vector.broadcast %cst_51 : f32 to vector<8x128xf32>
    %97 = arith.subf %96, %95 : vector<8x128xf32>
    %cst_52 = arith.constant 0.000000e+00 : f32
    %98 = vector.broadcast %cst_52 : f32 to vector<8x128xf32>
    %99 = arith.maximumf %97, %98 : vector<8x128xf32>
    %cst_53 = arith.constant 5.000000e-01 : f32
    %100 = vector.broadcast %cst_53 : f32 to vector<8x128xf32>
    %101 = arith.mulf %100, %99 : vector<8x128xf32>
    %102 = arith.subf %92, %101 : vector<8x128xf32>
    %cst_54 = arith.constant 0.0785398185 : f32
    %cst_55 = arith.constant 3.06305289 : f32
    %103 = vector.broadcast %cst_54 : f32 to vector<8x128xf32>
    %104 = arith.maximumf %103, %102 : vector<8x128xf32>
    %105 = vector.broadcast %cst_55 : f32 to vector<8x128xf32>
    %106 = arith.minimumf %105, %104 : vector<8x128xf32>
    %c4_56 = arith.constant 4 : index
    %c0_57 = arith.constant 0 : index
    %c0_58 = arith.constant 0 : index
    %107 = vector.load %arg2[%c4_56, %c0_57, %c0_58] : memref<8x8x128xf32, #tpu.memory_space<vmem>>, vector<1x8x128xf32>
    %108 = vector.shape_cast %107 : vector<1x8x128xf32> to vector<8x128xf32>
    %109 = vector.shape_cast %106 : vector<8x128xf32> to vector<1x8x128xf32>
    tpu.vector_store %arg2[%c4_56, %c0_57, %c0_58], %109 {strides = array<i32>} : memref<8x8x128xf32, #tpu.memory_space<vmem>>, vector<1x8x128xf32>,
    %110 = arith.subf %106, %84 : vector<8x128xf32>
    %cst_59 = arith.constant 0.0785398185 : f32
    %111 = vector.broadcast %cst_59 : f32 to vector<8x128xf32>
    %112 = arith.cmpf oge, %110, %111 : vector<8x128xf32>
    %113 = arith.andi %91, %112 : vector<8x128xi1>
    %114 = arith.addf %94, %101 : vector<8x128xf32>
    %c6 = arith.constant 6 : index
    %c0_60 = arith.constant 0 : index
    %c0_61 = arith.constant 0 : index
    %115 = vector.load %arg1[%c6, %c0_60, %c0_61] : memref<8x8x128xf32, #tpu.memory_space<vmem>>, vector<1x8x128xf32>
    %116 = vector.shape_cast %115 : vector<1x8x128xf32> to vector<8x128xf32>
    %117 = arith.subf %116, %114 : vector<8x128xf32>
    %cst_62 = arith.constant 0.0785398185 : f32
    %118 = vector.broadcast %cst_62 : f32 to vector<8x128xf32>
    %119 = arith.subf %118, %117 : vector<8x128xf32>
    %cst_63 = arith.constant 0.000000e+00 : f32
    %120 = vector.broadcast %cst_63 : f32 to vector<8x128xf32>
    %121 = arith.maximumf %119, %120 : vector<8x128xf32>
    %cst_64 = arith.constant 5.000000e-01 : f32
    %122 = vector.broadcast %cst_64 : f32 to vector<8x128xf32>
    %123 = arith.mulf %122, %121 : vector<8x128xf32>
    %124 = arith.subf %114, %123 : vector<8x128xf32>
    %cst_65 = arith.constant 0.0785398185 : f32
    %cst_66 = arith.constant 3.06305289 : f32
    %125 = vector.broadcast %cst_65 : f32 to vector<8x128xf32>
    %126 = arith.maximumf %125, %124 : vector<8x128xf32>
    %127 = vector.broadcast %cst_66 : f32 to vector<8x128xf32>
    %128 = arith.minimumf %127, %126 : vector<8x128xf32>
    %c5_67 = arith.constant 5 : index
    %c0_68 = arith.constant 0 : index
    %c0_69 = arith.constant 0 : index
    %129 = vector.load %arg2[%c5_67, %c0_68, %c0_69] : memref<8x8x128xf32, #tpu.memory_space<vmem>>, vector<1x8x128xf32>
    %130 = vector.shape_cast %129 : vector<1x8x128xf32> to vector<8x128xf32>
    %131 = vector.shape_cast %128 : vector<8x128xf32> to vector<1x8x128xf32>
    tpu.vector_store %arg2[%c5_67, %c0_68, %c0_69], %131 {strides = array<i32>} : memref<8x8x128xf32, #tpu.memory_space<vmem>>, vector<1x8x128xf32>,
    %132 = arith.subf %128, %106 : vector<8x128xf32>
    %cst_70 = arith.constant 0.0785398185 : f32
    %133 = vector.broadcast %cst_70 : f32 to vector<8x128xf32>
    %134 = arith.cmpf oge, %132, %133 : vector<8x128xf32>
    %135 = arith.andi %113, %134 : vector<8x128xi1>
    %136 = arith.addf %116, %123 : vector<8x128xf32>
    %c7 = arith.constant 7 : index
    %c0_71 = arith.constant 0 : index
    %c0_72 = arith.constant 0 : index
    %137 = vector.load %arg1[%c7, %c0_71, %c0_72] : memref<8x8x128xf32, #tpu.memory_space<vmem>>, vector<1x8x128xf32>
    %138 = vector.shape_cast %137 : vector<1x8x128xf32> to vector<8x128xf32>
    %139 = arith.subf %138, %136 : vector<8x128xf32>
    %cst_73 = arith.constant 0.0785398185 : f32
    %140 = vector.broadcast %cst_73 : f32 to vector<8x128xf32>
    %141 = arith.subf %140, %139 : vector<8x128xf32>
    %cst_74 = arith.constant 0.000000e+00 : f32
    %142 = vector.broadcast %cst_74 : f32 to vector<8x128xf32>
    %143 = arith.maximumf %141, %142 : vector<8x128xf32>
    %cst_75 = arith.constant 5.000000e-01 : f32
    %144 = vector.broadcast %cst_75 : f32 to vector<8x128xf32>
    %145 = arith.mulf %144, %143 : vector<8x128xf32>
    %146 = arith.subf %136, %145 : vector<8x128xf32>
    %cst_76 = arith.constant 0.0785398185 : f32
    %cst_77 = arith.constant 3.06305289 : f32
    %147 = vector.broadcast %cst_76 : f32 to vector<8x128xf32>
    %148 = arith.maximumf %147, %146 : vector<8x128xf32>
    %149 = vector.broadcast %cst_77 : f32 to vector<8x128xf32>
    %150 = arith.minimumf %149, %148 : vector<8x128xf32>
    %c6_78 = arith.constant 6 : index
    %c0_79 = arith.constant 0 : index
    %c0_80 = arith.constant 0 : index
    %151 = vector.load %arg2[%c6_78, %c0_79, %c0_80] : memref<8x8x128xf32, #tpu.memory_space<vmem>>, vector<1x8x128xf32>
    %152 = vector.shape_cast %151 : vector<1x8x128xf32> to vector<8x128xf32>
    %153 = vector.shape_cast %150 : vector<8x128xf32> to vector<1x8x128xf32>
    tpu.vector_store %arg2[%c6_78, %c0_79, %c0_80], %153 {strides = array<i32>} : memref<8x8x128xf32, #tpu.memory_space<vmem>>, vector<1x8x128xf32>,
    %154 = arith.subf %150, %128 : vector<8x128xf32>
    %cst_81 = arith.constant 0.0785398185 : f32
    %155 = vector.broadcast %cst_81 : f32 to vector<8x128xf32>
    %156 = arith.cmpf oge, %154, %155 : vector<8x128xf32>
    %157 = arith.andi %135, %156 : vector<8x128xi1>
    %158 = arith.addf %138, %145 : vector<8x128xf32>
    %cst_82 = arith.constant 0.0785398185 : f32
    %cst_83 = arith.constant 3.06305289 : f32
    %159 = vector.broadcast %cst_82 : f32 to vector<8x128xf32>
    %160 = arith.maximumf %159, %158 : vector<8x128xf32>
    %161 = vector.broadcast %cst_83 : f32 to vector<8x128xf32>
    %162 = arith.minimumf %161, %160 : vector<8x128xf32>
    %c7_84 = arith.constant 7 : index
    %c0_85 = arith.constant 0 : index
    %c0_86 = arith.constant 0 : index
    %163 = vector.load %arg2[%c7_84, %c0_85, %c0_86] : memref<8x8x128xf32, #tpu.memory_space<vmem>>, vector<1x8x128xf32>
    %164 = vector.shape_cast %163 : vector<1x8x128xf32> to vector<8x128xf32>
    %165 = vector.shape_cast %162 : vector<8x128xf32> to vector<1x8x128xf32>
    tpu.vector_store %arg2[%c7_84, %c0_85, %c0_86], %165 {strides = array<i32>} : memref<8x8x128xf32, #tpu.memory_space<vmem>>, vector<1x8x128xf32>,
    %166 = arith.subf %162, %150 : vector<8x128xf32>
    %cst_87 = arith.constant 0.0785398185 : f32
    %167 = vector.broadcast %cst_87 : f32 to vector<8x128xf32>
    %168 = arith.cmpf oge, %166, %167 : vector<8x128xf32>
    %169 = arith.andi %157, %168 : vector<8x128xi1>
    %cst_88 = arith.constant 1.000000e+00 : f32
    %cst_89 = arith.constant 0.000000e+00 : f32
    %170 = vector.broadcast %cst_88 : f32 to vector<8x128xf32>
    %171 = vector.broadcast %cst_89 : f32 to vector<8x128xf32>
    %172 = arith.select %169, %170, %171 : vector<8x128xi1>, vector<8x128xf32>
    %173 = vector.shape_cast %172 : vector<8x128xf32> to vector<1x8x128xf32>
    %cst_90 = arith.constant dense<0x7F800000> : vector<1xf32>
    %174 = vector.multi_reduction <minimumf>, %173, %cst_90 [1, 2] : vector<1x8x128xf32> to vector<1xf32>
    %175 = vector.shape_cast %174 : vector<1xf32> to vector<1x1x1xf32>
    %176 = vector.extract %175[0, 0, 0] : f32 from vector<1x1x1xf32>
    %cst_91 = arith.constant 0.000000e+00 : f32
    %177 = arith.cmpf ogt, %176, %cst_91 : f32
    %178 = arith.extui %177 : i1 to i32
    %c0_92 = arith.constant 0 : index
    %179 = memref.load %arg4[%c0_92] : memref<1xi32, #tpu.memory_space<smem>>
    memref.store %178, %arg4[%c0_92] : memref<1xi32, #tpu.memory_space<smem>>
    %c0_93 = arith.constant 0 : index
    %180 = memref.load %arg4[%c0_93] : memref<1xi32, #tpu.memory_space<smem>>
    %c0_i32 = arith.constant 0 : i32
    %181 = arith.cmpi eq, %180, %c0_i32 : i32
    %182 = arith.extui %181 : i1 to i32
    %cst_94 = arith.constant 0.0785398185 : f32
    %cst_95 = arith.constant 3.06305289 : f32
    %cst_96 = arith.constant 0.0785398185 : f32
    %c0_i32_97 = arith.constant 0 : i32
    %183 = arith.cmpi ne, %182, %c0_i32_97 : i32
    scf.if %183 {
      %c1_103 = arith.constant 1 : index
      %c0_104 = arith.constant 0 : index
      %c0_105 = arith.constant 0 : index
      %188 = vector.load %arg2[%c1_103, %c0_104, %c0_105] : memref<8x8x128xf32, #tpu.memory_space<vmem>>, vector<1x8x128xf32>
      %189 = vector.shape_cast %188 : vector<1x8x128xf32> to vector<8x128xf32>
      %c2_106 = arith.constant 2 : index
      %c0_107 = arith.constant 0 : index
      %c0_108 = arith.constant 0 : index
      %190 = vector.load %arg2[%c2_106, %c0_107, %c0_108] : memref<8x8x128xf32, #tpu.memory_space<vmem>>, vector<1x8x128xf32>
      %191 = vector.shape_cast %190 : vector<1x8x128xf32> to vector<8x128xf32>
      %192 = arith.subf %191, %189 : vector<8x128xf32>
      %193 = vector.broadcast %cst_94 : f32 to vector<8x128xf32>
      %194 = arith.subf %193, %192 : vector<8x128xf32>
      %cst_109 = arith.constant 0.000000e+00 : f32
      %195 = vector.broadcast %cst_109 : f32 to vector<8x128xf32>
      %196 = arith.maximumf %194, %195 : vector<8x128xf32>
      %cst_110 = arith.constant 5.000000e-01 : f32
      %197 = vector.broadcast %cst_110 : f32 to vector<8x128xf32>
      %198 = arith.mulf %197, %196 : vector<8x128xf32>
      %199 = arith.subf %189, %198 : vector<8x128xf32>
      %200 = vector.broadcast %cst_94 : f32 to vector<8x128xf32>
      %201 = arith.maximumf %200, %199 : vector<8x128xf32>
      %202 = vector.broadcast %cst_95 : f32 to vector<8x128xf32>
      %203 = arith.minimumf %202, %201 : vector<8x128xf32>
      %c1_111 = arith.constant 1 : index
      %c0_112 = arith.constant 0 : index
      %c0_113 = arith.constant 0 : index
      %204 = vector.load %arg2[%c1_111, %c0_112, %c0_113] : memref<8x8x128xf32, #tpu.memory_space<vmem>>, vector<1x8x128xf32>
      %205 = vector.shape_cast %204 : vector<1x8x128xf32> to vector<8x128xf32>
      %206 = vector.shape_cast %203 : vector<8x128xf32> to vector<1x8x128xf32>
      tpu.vector_store %arg2[%c1_111, %c0_112, %c0_113], %206 {strides = array<i32>} : memref<8x8x128xf32, #tpu.memory_space<vmem>>, vector<1x8x128xf32>,
      %207 = arith.addf %191, %198 : vector<8x128xf32>
      %c3_114 = arith.constant 3 : index
      %c0_115 = arith.constant 0 : index
      %c0_116 = arith.constant 0 : index
      %208 = vector.load %arg2[%c3_114, %c0_115, %c0_116] : memref<8x8x128xf32, #tpu.memory_space<vmem>>, vector<1x8x128xf32>
      %209 = vector.shape_cast %208 : vector<1x8x128xf32> to vector<8x128xf32>
      %210 = arith.subf %209, %207 : vector<8x128xf32>
      %211 = vector.broadcast %cst_94 : f32 to vector<8x128xf32>
      %212 = arith.subf %211, %210 : vector<8x128xf32>
      %cst_117 = arith.constant 0.000000e+00 : f32
      %213 = vector.broadcast %cst_117 : f32 to vector<8x128xf32>
      %214 = arith.maximumf %212, %213 : vector<8x128xf32>
      %cst_118 = arith.constant 5.000000e-01 : f32
      %215 = vector.broadcast %cst_118 : f32 to vector<8x128xf32>
      %216 = arith.mulf %215, %214 : vector<8x128xf32>
      %217 = arith.subf %207, %216 : vector<8x128xf32>
      %218 = vector.broadcast %cst_94 : f32 to vector<8x128xf32>
      %219 = arith.maximumf %218, %217 : vector<8x128xf32>
      %220 = vector.broadcast %cst_95 : f32 to vector<8x128xf32>
      %221 = arith.minimumf %220, %219 : vector<8x128xf32>
      %c2_119 = arith.constant 2 : index
      %c0_120 = arith.constant 0 : index
      %c0_121 = arith.constant 0 : index
      %222 = vector.load %arg2[%c2_119, %c0_120, %c0_121] : memref<8x8x128xf32, #tpu.memory_space<vmem>>, vector<1x8x128xf32>
      %223 = vector.shape_cast %222 : vector<1x8x128xf32> to vector<8x128xf32>
      %224 = vector.shape_cast %221 : vector<8x128xf32> to vector<1x8x128xf32>
      tpu.vector_store %arg2[%c2_119, %c0_120, %c0_121], %224 {strides = array<i32>} : memref<8x8x128xf32, #tpu.memory_space<vmem>>, vector<1x8x128xf32>,
      %225 = arith.subf %221, %203 : vector<8x128xf32>
      %226 = vector.broadcast %cst_96 : f32 to vector<8x128xf32>
      %227 = arith.cmpf oge, %225, %226 : vector<8x128xf32>
      %228 = arith.addf %209, %216 : vector<8x128xf32>
      %c4_122 = arith.constant 4 : index
      %c0_123 = arith.constant 0 : index
      %c0_124 = arith.constant 0 : index
      %229 = vector.load %arg2[%c4_122, %c0_123, %c0_124] : memref<8x8x128xf32, #tpu.memory_space<vmem>>, vector<1x8x128xf32>
      %230 = vector.shape_cast %229 : vector<1x8x128xf32> to vector<8x128xf32>
      %231 = arith.subf %230, %228 : vector<8x128xf32>
      %232 = vector.broadcast %cst_94 : f32 to vector<8x128xf32>
      %233 = arith.subf %232, %231 : vector<8x128xf32>
      %cst_125 = arith.constant 0.000000e+00 : f32
      %234 = vector.broadcast %cst_125 : f32 to vector<8x128xf32>
      %235 = arith.maximumf %233, %234 : vector<8x128xf32>
      %cst_126 = arith.constant 5.000000e-01 : f32
      %236 = vector.broadcast %cst_126 : f32 to vector<8x128xf32>
      %237 = arith.mulf %236, %235 : vector<8x128xf32>
      %238 = arith.subf %228, %237 : vector<8x128xf32>
      %239 = vector.broadcast %cst_94 : f32 to vector<8x128xf32>
      %240 = arith.maximumf %239, %238 : vector<8x128xf32>
      %241 = vector.broadcast %cst_95 : f32 to vector<8x128xf32>
      %242 = arith.minimumf %241, %240 : vector<8x128xf32>
      %c3_127 = arith.constant 3 : index
      %c0_128 = arith.constant 0 : index
      %c0_129 = arith.constant 0 : index
      %243 = vector.load %arg2[%c3_127, %c0_128, %c0_129] : memref<8x8x128xf32, #tpu.memory_space<vmem>>, vector<1x8x128xf32>
      %244 = vector.shape_cast %243 : vector<1x8x128xf32> to vector<8x128xf32>
      %245 = vector.shape_cast %242 : vector<8x128xf32> to vector<1x8x128xf32>
      tpu.vector_store %arg2[%c3_127, %c0_128, %c0_129], %245 {strides = array<i32>} : memref<8x8x128xf32, #tpu.memory_space<vmem>>, vector<1x8x128xf32>,
      %246 = arith.subf %242, %221 : vector<8x128xf32>
      %247 = vector.broadcast %cst_96 : f32 to vector<8x128xf32>
      %248 = arith.cmpf oge, %246, %247 : vector<8x128xf32>
      %249 = arith.andi %227, %248 : vector<8x128xi1>
      %250 = arith.addf %230, %237 : vector<8x128xf32>
      %c5_130 = arith.constant 5 : index
      %c0_131 = arith.constant 0 : index
      %c0_132 = arith.constant 0 : index
      %251 = vector.load %arg2[%c5_130, %c0_131, %c0_132] : memref<8x8x128xf32, #tpu.memory_space<vmem>>, vector<1x8x128xf32>
      %252 = vector.shape_cast %251 : vector<1x8x128xf32> to vector<8x128xf32>
      %253 = arith.subf %252, %250 : vector<8x128xf32>
      %254 = vector.broadcast %cst_94 : f32 to vector<8x128xf32>
      %255 = arith.subf %254, %253 : vector<8x128xf32>
      %cst_133 = arith.constant 0.000000e+00 : f32
      %256 = vector.broadcast %cst_133 : f32 to vector<8x128xf32>
      %257 = arith.maximumf %255, %256 : vector<8x128xf32>
      %cst_134 = arith.constant 5.000000e-01 : f32
      %258 = vector.broadcast %cst_134 : f32 to vector<8x128xf32>
      %259 = arith.mulf %258, %257 : vector<8x128xf32>
      %260 = arith.subf %250, %259 : vector<8x128xf32>
      %261 = vector.broadcast %cst_94 : f32 to vector<8x128xf32>
      %262 = arith.maximumf %261, %260 : vector<8x128xf32>
      %263 = vector.broadcast %cst_95 : f32 to vector<8x128xf32>
      %264 = arith.minimumf %263, %262 : vector<8x128xf32>
      %c4_135 = arith.constant 4 : index
      %c0_136 = arith.constant 0 : index
      %c0_137 = arith.constant 0 : index
      %265 = vector.load %arg2[%c4_135, %c0_136, %c0_137] : memref<8x8x128xf32, #tpu.memory_space<vmem>>, vector<1x8x128xf32>
      %266 = vector.shape_cast %265 : vector<1x8x128xf32> to vector<8x128xf32>
      %267 = vector.shape_cast %264 : vector<8x128xf32> to vector<1x8x128xf32>
      tpu.vector_store %arg2[%c4_135, %c0_136, %c0_137], %267 {strides = array<i32>} : memref<8x8x128xf32, #tpu.memory_space<vmem>>, vector<1x8x128xf32>,
      %268 = arith.subf %264, %242 : vector<8x128xf32>
      %269 = vector.broadcast %cst_96 : f32 to vector<8x128xf32>
      %270 = arith.cmpf oge, %268, %269 : vector<8x128xf32>
      %271 = arith.andi %249, %270 : vector<8x128xi1>
      %272 = arith.addf %252, %259 : vector<8x128xf32>
      %c6_138 = arith.constant 6 : index
      %c0_139 = arith.constant 0 : index
      %c0_140 = arith.constant 0 : index
      %273 = vector.load %arg2[%c6_138, %c0_139, %c0_140] : memref<8x8x128xf32, #tpu.memory_space<vmem>>, vector<1x8x128xf32>
      %274 = vector.shape_cast %273 : vector<1x8x128xf32> to vector<8x128xf32>
      %275 = arith.subf %274, %272 : vector<8x128xf32>
      %276 = vector.broadcast %cst_94 : f32 to vector<8x128xf32>
      %277 = arith.subf %276, %275 : vector<8x128xf32>
      %cst_141 = arith.constant 0.000000e+00 : f32
      %278 = vector.broadcast %cst_141 : f32 to vector<8x128xf32>
      %279 = arith.maximumf %277, %278 : vector<8x128xf32>
      %cst_142 = arith.constant 5.000000e-01 : f32
      %280 = vector.broadcast %cst_142 : f32 to vector<8x128xf32>
      %281 = arith.mulf %280, %279 : vector<8x128xf32>
      %282 = arith.subf %272, %281 : vector<8x128xf32>
      %283 = vector.broadcast %cst_94 : f32 to vector<8x128xf32>
      %284 = arith.maximumf %283, %282 : vector<8x128xf32>
      %285 = vector.broadcast %cst_95 : f32 to vector<8x128xf32>
      %286 = arith.minimumf %285, %284 : vector<8x128xf32>
      %c5_143 = arith.constant 5 : index
      %c0_144 = arith.constant 0 : index
      %c0_145 = arith.constant 0 : index
      %287 = vector.load %arg2[%c5_143, %c0_144, %c0_145] : memref<8x8x128xf32, #tpu.memory_space<vmem>>, vector<1x8x128xf32>
      %288 = vector.shape_cast %287 : vector<1x8x128xf32> to vector<8x128xf32>
      %289 = vector.shape_cast %286 : vector<8x128xf32> to vector<1x8x128xf32>
      tpu.vector_store %arg2[%c5_143, %c0_144, %c0_145], %289 {strides = array<i32>} : memref<8x8x128xf32, #tpu.memory_space<vmem>>, vector<1x8x128xf32>,
      %290 = arith.subf %286, %264 : vector<8x128xf32>
      %291 = vector.broadcast %cst_96 : f32 to vector<8x128xf32>
      %292 = arith.cmpf oge, %290, %291 : vector<8x128xf32>
      %293 = arith.andi %271, %292 : vector<8x128xi1>
      %294 = arith.addf %274, %281 : vector<8x128xf32>
      %c7_146 = arith.constant 7 : index
      %c0_147 = arith.constant 0 : index
      %c0_148 = arith.constant 0 : index
      %295 = vector.load %arg2[%c7_146, %c0_147, %c0_148] : memref<8x8x128xf32, #tpu.memory_space<vmem>>, vector<1x8x128xf32>
      %296 = vector.shape_cast %295 : vector<1x8x128xf32> to vector<8x128xf32>
      %297 = arith.subf %296, %294 : vector<8x128xf32>
      %298 = vector.broadcast %cst_94 : f32 to vector<8x128xf32>
      %299 = arith.subf %298, %297 : vector<8x128xf32>
      %cst_149 = arith.constant 0.000000e+00 : f32
      %300 = vector.broadcast %cst_149 : f32 to vector<8x128xf32>
      %301 = arith.maximumf %299, %300 : vector<8x128xf32>
      %cst_150 = arith.constant 5.000000e-01 : f32
      %302 = vector.broadcast %cst_150 : f32 to vector<8x128xf32>
      %303 = arith.mulf %302, %301 : vector<8x128xf32>
      %304 = arith.subf %294, %303 : vector<8x128xf32>
      %305 = vector.broadcast %cst_94 : f32 to vector<8x128xf32>
      %306 = arith.maximumf %305, %304 : vector<8x128xf32>
      %307 = vector.broadcast %cst_95 : f32 to vector<8x128xf32>
      %308 = arith.minimumf %307, %306 : vector<8x128xf32>
      %c6_151 = arith.constant 6 : index
      %c0_152 = arith.constant 0 : index
      %c0_153 = arith.constant 0 : index
      %309 = vector.load %arg2[%c6_151, %c0_152, %c0_153] : memref<8x8x128xf32, #tpu.memory_space<vmem>>, vector<1x8x128xf32>
      %310 = vector.shape_cast %309 : vector<1x8x128xf32> to vector<8x128xf32>
      %311 = vector.shape_cast %308 : vector<8x128xf32> to vector<1x8x128xf32>
      tpu.vector_store %arg2[%c6_151, %c0_152, %c0_153], %311 {strides = array<i32>} : memref<8x8x128xf32, #tpu.memory_space<vmem>>, vector<1x8x128xf32>,
      %312 = arith.subf %308, %286 : vector<8x128xf32>
      %313 = vector.broadcast %cst_96 : f32 to vector<8x128xf32>
      %314 = arith.cmpf oge, %312, %313 : vector<8x128xf32>
      %315 = arith.andi %293, %314 : vector<8x128xi1>
      %316 = arith.addf %296, %303 : vector<8x128xf32>
      %317 = vector.broadcast %cst_94 : f32 to vector<8x128xf32>
      %318 = arith.maximumf %317, %316 : vector<8x128xf32>
      %319 = vector.broadcast %cst_95 : f32 to vector<8x128xf32>
      %320 = arith.minimumf %319, %318 : vector<8x128xf32>
      %c7_154 = arith.constant 7 : index
      %c0_155 = arith.constant 0 : index
      %c0_156 = arith.constant 0 : index
      %321 = vector.load %arg2[%c7_154, %c0_155, %c0_156] : memref<8x8x128xf32, #tpu.memory_space<vmem>>, vector<1x8x128xf32>
      %322 = vector.shape_cast %321 : vector<1x8x128xf32> to vector<8x128xf32>
      %323 = vector.shape_cast %320 : vector<8x128xf32> to vector<1x8x128xf32>
      tpu.vector_store %arg2[%c7_154, %c0_155, %c0_156], %323 {strides = array<i32>} : memref<8x8x128xf32, #tpu.memory_space<vmem>>, vector<1x8x128xf32>,
      %324 = arith.subf %320, %308 : vector<8x128xf32>
      %325 = vector.broadcast %cst_96 : f32 to vector<8x128xf32>
      %326 = arith.cmpf oge, %324, %325 : vector<8x128xf32>
      %327 = arith.andi %315, %326 : vector<8x128xi1>
      %cst_157 = arith.constant 1.000000e+00 : f32
      %cst_158 = arith.constant 0.000000e+00 : f32
      %328 = vector.broadcast %cst_157 : f32 to vector<8x128xf32>
      %329 = vector.broadcast %cst_158 : f32 to vector<8x128xf32>
      %330 = arith.select %327, %328, %329 : vector<8x128xi1>, vector<8x128xf32>
      %331 = vector.shape_cast %330 : vector<8x128xf32> to vector<1x8x128xf32>
      %cst_159 = arith.constant dense<0x7F800000> : vector<1xf32>
      %332 = vector.multi_reduction <minimumf>, %331, %cst_159 [1, 2] : vector<1x8x128xf32> to vector<1xf32>
      %333 = vector.shape_cast %332 : vector<1xf32> to vector<1x1x1xf32>
      %334 = vector.extract %333[0, 0, 0] : f32 from vector<1x1x1xf32>
      %cst_160 = arith.constant 0.000000e+00 : f32
      %335 = arith.cmpf ogt, %334, %cst_160 : f32
      %336 = arith.extui %335 : i1 to i32
      %c0_161 = arith.constant 0 : index
      %337 = memref.load %arg4[%c0_161] : memref<1xi32, #tpu.memory_space<smem>>
      memref.store %336, %arg4[%c0_161] : memref<1xi32, #tpu.memory_space<smem>>
    } else {
    }
    %c0_98 = arith.constant 0 : index
    %184 = memref.load %arg4[%c0_98] : memref<1xi32, #tpu.memory_space<smem>>
    %c0_i32_99 = arith.constant 0 : i32
    %185 = arith.cmpi eq, %184, %c0_i32_99 : i32
    %186 = arith.extui %185 : i1 to i32
    %cst_100 = arith.constant 0.0785398185 : f32
    %cst_101 = arith.constant 3.06305289 : f32
    %c0_i32_102 = arith.constant 0 : i32
    %187 = arith.cmpi ne, %186, %c0_i32_102 : i32
    scf.if %187 {
      %c1_103 = arith.constant 1 : index
      %c0_104 = arith.constant 0 : index
      %c0_105 = arith.constant 0 : index
      %188 = vector.load %arg2[%c1_103, %c0_104, %c0_105] : memref<8x8x128xf32, #tpu.memory_space<vmem>>, vector<1x8x128xf32>
      %189 = vector.shape_cast %188 : vector<1x8x128xf32> to vector<8x128xf32>
      %c2_106 = arith.constant 2 : index
      %c0_107 = arith.constant 0 : index
      %c0_108 = arith.constant 0 : index
      %190 = vector.load %arg2[%c2_106, %c0_107, %c0_108] : memref<8x8x128xf32, #tpu.memory_space<vmem>>, vector<1x8x128xf32>
      %191 = vector.shape_cast %190 : vector<1x8x128xf32> to vector<8x128xf32>
      %192 = arith.subf %191, %189 : vector<8x128xf32>
      %193 = vector.broadcast %cst_100 : f32 to vector<8x128xf32>
      %194 = arith.subf %193, %192 : vector<8x128xf32>
      %cst_109 = arith.constant 0.000000e+00 : f32
      %195 = vector.broadcast %cst_109 : f32 to vector<8x128xf32>
      %196 = arith.maximumf %194, %195 : vector<8x128xf32>
      %cst_110 = arith.constant 5.000000e-01 : f32
      %197 = vector.broadcast %cst_110 : f32 to vector<8x128xf32>
      %198 = arith.mulf %197, %196 : vector<8x128xf32>
      %199 = arith.subf %189, %198 : vector<8x128xf32>
      %200 = vector.broadcast %cst_100 : f32 to vector<8x128xf32>
      %201 = arith.maximumf %200, %199 : vector<8x128xf32>
      %202 = vector.broadcast %cst_101 : f32 to vector<8x128xf32>
      %203 = arith.minimumf %202, %201 : vector<8x128xf32>
      %c1_111 = arith.constant 1 : index
      %c0_112 = arith.constant 0 : index
      %c0_113 = arith.constant 0 : index
      %204 = vector.load %arg2[%c1_111, %c0_112, %c0_113] : memref<8x8x128xf32, #tpu.memory_space<vmem>>, vector<1x8x128xf32>
      %205 = vector.shape_cast %204 : vector<1x8x128xf32> to vector<8x128xf32>
      %206 = vector.shape_cast %203 : vector<8x128xf32> to vector<1x8x128xf32>
      tpu.vector_store %arg2[%c1_111, %c0_112, %c0_113], %206 {strides = array<i32>} : memref<8x8x128xf32, #tpu.memory_space<vmem>>, vector<1x8x128xf32>,
      %207 = arith.addf %191, %198 : vector<8x128xf32>
      %c3_114 = arith.constant 3 : index
      %c0_115 = arith.constant 0 : index
      %c0_116 = arith.constant 0 : index
      %208 = vector.load %arg2[%c3_114, %c0_115, %c0_116] : memref<8x8x128xf32, #tpu.memory_space<vmem>>, vector<1x8x128xf32>
      %209 = vector.shape_cast %208 : vector<1x8x128xf32> to vector<8x128xf32>
      %210 = arith.subf %209, %207 : vector<8x128xf32>
      %211 = vector.broadcast %cst_100 : f32 to vector<8x128xf32>
      %212 = arith.subf %211, %210 : vector<8x128xf32>
      %cst_117 = arith.constant 0.000000e+00 : f32
      %213 = vector.broadcast %cst_117 : f32 to vector<8x128xf32>
      %214 = arith.maximumf %212, %213 : vector<8x128xf32>
      %cst_118 = arith.constant 5.000000e-01 : f32
      %215 = vector.broadcast %cst_118 : f32 to vector<8x128xf32>
      %216 = arith.mulf %215, %214 : vector<8x128xf32>
      %217 = arith.subf %207, %216 : vector<8x128xf32>
      %218 = vector.broadcast %cst_100 : f32 to vector<8x128xf32>
      %219 = arith.maximumf %218, %217 : vector<8x128xf32>
      %220 = vector.broadcast %cst_101 : f32 to vector<8x128xf32>
      %221 = arith.minimumf %220, %219 : vector<8x128xf32>
      %c2_119 = arith.constant 2 : index
      %c0_120 = arith.constant 0 : index
      %c0_121 = arith.constant 0 : index
      %222 = vector.load %arg2[%c2_119, %c0_120, %c0_121] : memref<8x8x128xf32, #tpu.memory_space<vmem>>, vector<1x8x128xf32>
      %223 = vector.shape_cast %222 : vector<1x8x128xf32> to vector<8x128xf32>
      %224 = vector.shape_cast %221 : vector<8x128xf32> to vector<1x8x128xf32>
      tpu.vector_store %arg2[%c2_119, %c0_120, %c0_121], %224 {strides = array<i32>} : memref<8x8x128xf32, #tpu.memory_space<vmem>>, vector<1x8x128xf32>,
      %225 = arith.addf %209, %216 : vector<8x128xf32>
      %c4_122 = arith.constant 4 : index
      %c0_123 = arith.constant 0 : index
      %c0_124 = arith.constant 0 : index
      %226 = vector.load %arg2[%c4_122, %c0_123, %c0_124] : memref<8x8x128xf32, #tpu.memory_space<vmem>>, vector<1x8x128xf32>
      %227 = vector.shape_cast %226 : vector<1x8x128xf32> to vector<8x128xf32>
      %228 = arith.subf %227, %225 : vector<8x128xf32>
      %229 = vector.broadcast %cst_100 : f32 to vector<8x128xf32>
      %230 = arith.subf %229, %228 : vector<8x128xf32>
      %cst_125 = arith.constant 0.000000e+00 : f32
      %231 = vector.broadcast %cst_125 : f32 to vector<8x128xf32>
      %232 = arith.maximumf %230, %231 : vector<8x128xf32>
      %cst_126 = arith.constant 5.000000e-01 : f32
      %233 = vector.broadcast %cst_126 : f32 to vector<8x128xf32>
      %234 = arith.mulf %233, %232 : vector<8x128xf32>
      %235 = arith.subf %225, %234 : vector<8x128xf32>
      %236 = vector.broadcast %cst_100 : f32 to vector<8x128xf32>
      %237 = arith.maximumf %236, %235 : vector<8x128xf32>
      %238 = vector.broadcast %cst_101 : f32 to vector<8x128xf32>
      %239 = arith.minimumf %238, %237 : vector<8x128xf32>
      %c3_127 = arith.constant 3 : index
      %c0_128 = arith.constant 0 : index
      %c0_129 = arith.constant 0 : index
      %240 = vector.load %arg2[%c3_127, %c0_128, %c0_129] : memref<8x8x128xf32, #tpu.memory_space<vmem>>, vector<1x8x128xf32>
      %241 = vector.shape_cast %240 : vector<1x8x128xf32> to vector<8x128xf32>
      %242 = vector.shape_cast %239 : vector<8x128xf32> to vector<1x8x128xf32>
      tpu.vector_store %arg2[%c3_127, %c0_128, %c0_129], %242 {strides = array<i32>} : memref<8x8x128xf32, #tpu.memory_space<vmem>>, vector<1x8x128xf32>,
      %243 = arith.addf %227, %234 : vector<8x128xf32>
      %c5_130 = arith.constant 5 : index
      %c0_131 = arith.constant 0 : index
      %c0_132 = arith.constant 0 : index
      %244 = vector.load %arg2[%c5_130, %c0_131, %c0_132] : memref<8x8x128xf32, #tpu.memory_space<vmem>>, vector<1x8x128xf32>
      %245 = vector.shape_cast %244 : vector<1x8x128xf32> to vector<8x128xf32>
      %246 = arith.subf %245, %243 : vector<8x128xf32>
      %247 = vector.broadcast %cst_100 : f32 to vector<8x128xf32>
      %248 = arith.subf %247, %246 : vector<8x128xf32>
      %cst_133 = arith.constant 0.000000e+00 : f32
      %249 = vector.broadcast %cst_133 : f32 to vector<8x128xf32>
      %250 = arith.maximumf %248, %249 : vector<8x128xf32>
      %cst_134 = arith.constant 5.000000e-01 : f32
      %251 = vector.broadcast %cst_134 : f32 to vector<8x128xf32>
      %252 = arith.mulf %251, %250 : vector<8x128xf32>
      %253 = arith.subf %243, %252 : vector<8x128xf32>
      %254 = vector.broadcast %cst_100 : f32 to vector<8x128xf32>
      %255 = arith.maximumf %254, %253 : vector<8x128xf32>
      %256 = vector.broadcast %cst_101 : f32 to vector<8x128xf32>
      %257 = arith.minimumf %256, %255 : vector<8x128xf32>
      %c4_135 = arith.constant 4 : index
      %c0_136 = arith.constant 0 : index
      %c0_137 = arith.constant 0 : index
      %258 = vector.load %arg2[%c4_135, %c0_136, %c0_137] : memref<8x8x128xf32, #tpu.memory_space<vmem>>, vector<1x8x128xf32>
      %259 = vector.shape_cast %258 : vector<1x8x128xf32> to vector<8x128xf32>
      %260 = vector.shape_cast %257 : vector<8x128xf32> to vector<1x8x128xf32>
      tpu.vector_store %arg2[%c4_135, %c0_136, %c0_137], %260 {strides = array<i32>} : memref<8x8x128xf32, #tpu.memory_space<vmem>>, vector<1x8x128xf32>,
      %261 = arith.addf %245, %252 : vector<8x128xf32>
      %c6_138 = arith.constant 6 : index
      %c0_139 = arith.constant 0 : index
      %c0_140 = arith.constant 0 : index
      %262 = vector.load %arg2[%c6_138, %c0_139, %c0_140] : memref<8x8x128xf32, #tpu.memory_space<vmem>>, vector<1x8x128xf32>
      %263 = vector.shape_cast %262 : vector<1x8x128xf32> to vector<8x128xf32>
      %264 = arith.subf %263, %261 : vector<8x128xf32>
      %265 = vector.broadcast %cst_100 : f32 to vector<8x128xf32>
      %266 = arith.subf %265, %264 : vector<8x128xf32>
      %cst_141 = arith.constant 0.000000e+00 : f32
      %267 = vector.broadcast %cst_141 : f32 to vector<8x128xf32>
      %268 = arith.maximumf %266, %267 : vector<8x128xf32>
      %cst_142 = arith.constant 5.000000e-01 : f32
      %269 = vector.broadcast %cst_142 : f32 to vector<8x128xf32>
      %270 = arith.mulf %269, %268 : vector<8x128xf32>
      %271 = arith.subf %261, %270 : vector<8x128xf32>
      %272 = vector.broadcast %cst_100 : f32 to vector<8x128xf32>
      %273 = arith.maximumf %272, %271 : vector<8x128xf32>
      %274 = vector.broadcast %cst_101 : f32 to vector<8x128xf32>
      %275 = arith.minimumf %274, %273 : vector<8x128xf32>
      %c5_143 = arith.constant 5 : index
      %c0_144 = arith.constant 0 : index
      %c0_145 = arith.constant 0 : index
      %276 = vector.load %arg2[%c5_143, %c0_144, %c0_145] : memref<8x8x128xf32, #tpu.memory_space<vmem>>, vector<1x8x128xf32>
      %277 = vector.shape_cast %276 : vector<1x8x128xf32> to vector<8x128xf32>
      %278 = vector.shape_cast %275 : vector<8x128xf32> to vector<1x8x128xf32>
      tpu.vector_store %arg2[%c5_143, %c0_144, %c0_145], %278 {strides = array<i32>} : memref<8x8x128xf32, #tpu.memory_space<vmem>>, vector<1x8x128xf32>,
      %279 = arith.addf %263, %270 : vector<8x128xf32>
      %c7_146 = arith.constant 7 : index
      %c0_147 = arith.constant 0 : index
      %c0_148 = arith.constant 0 : index
      %280 = vector.load %arg2[%c7_146, %c0_147, %c0_148] : memref<8x8x128xf32, #tpu.memory_space<vmem>>, vector<1x8x128xf32>
      %281 = vector.shape_cast %280 : vector<1x8x128xf32> to vector<8x128xf32>
      %282 = arith.subf %281, %279 : vector<8x128xf32>
      %283 = vector.broadcast %cst_100 : f32 to vector<8x128xf32>
      %284 = arith.subf %283, %282 : vector<8x128xf32>
      %cst_149 = arith.constant 0.000000e+00 : f32
      %285 = vector.broadcast %cst_149 : f32 to vector<8x128xf32>
      %286 = arith.maximumf %284, %285 : vector<8x128xf32>
      %cst_150 = arith.constant 5.000000e-01 : f32
      %287 = vector.broadcast %cst_150 : f32 to vector<8x128xf32>
      %288 = arith.mulf %287, %286 : vector<8x128xf32>
      %289 = arith.subf %279, %288 : vector<8x128xf32>
      %290 = vector.broadcast %cst_100 : f32 to vector<8x128xf32>
      %291 = arith.maximumf %290, %289 : vector<8x128xf32>
      %292 = vector.broadcast %cst_101 : f32 to vector<8x128xf32>
      %293 = arith.minimumf %292, %291 : vector<8x128xf32>
      %c6_151 = arith.constant 6 : index
      %c0_152 = arith.constant 0 : index
      %c0_153 = arith.constant 0 : index
      %294 = vector.load %arg2[%c6_151, %c0_152, %c0_153] : memref<8x8x128xf32, #tpu.memory_space<vmem>>, vector<1x8x128xf32>
      %295 = vector.shape_cast %294 : vector<1x8x128xf32> to vector<8x128xf32>
      %296 = vector.shape_cast %293 : vector<8x128xf32> to vector<1x8x128xf32>
      tpu.vector_store %arg2[%c6_151, %c0_152, %c0_153], %296 {strides = array<i32>} : memref<8x8x128xf32, #tpu.memory_space<vmem>>, vector<1x8x128xf32>,
      %297 = arith.addf %281, %288 : vector<8x128xf32>
      %298 = vector.broadcast %cst_100 : f32 to vector<8x128xf32>
      %299 = arith.maximumf %298, %297 : vector<8x128xf32>
      %300 = vector.broadcast %cst_101 : f32 to vector<8x128xf32>
      %301 = arith.minimumf %300, %299 : vector<8x128xf32>
      %c7_154 = arith.constant 7 : index
      %c0_155 = arith.constant 0 : index
      %c0_156 = arith.constant 0 : index
      %302 = vector.load %arg2[%c7_154, %c0_155, %c0_156] : memref<8x8x128xf32, #tpu.memory_space<vmem>>, vector<1x8x128xf32>
      %303 = vector.shape_cast %302 : vector<1x8x128xf32> to vector<8x128xf32>
      %304 = vector.shape_cast %301 : vector<8x128xf32> to vector<1x8x128xf32>
      tpu.vector_store %arg2[%c7_154, %c0_155, %c0_156], %304 {strides = array<i32>} : memref<8x8x128xf32, #tpu.memory_space<vmem>>, vector<1x8x128xf32>,
    } else {
    }
    return
  }
  func.func @transform_0(%arg0: i32) -> (i32, i32, i32) {
    %c0_i32 = arith.constant 0 : i32
    %c0_i32_0 = arith.constant 0 : i32
    %c0_i32_1 = arith.constant 0 : i32
    return %c0_i32, %arg0, %c0_i32_0 : i32, i32, i32
  }
  func.func @transform_1(%arg0: i32) -> (i32, i32, i32) {
    %c0_i32 = arith.constant 0 : i32
    %c0_i32_0 = arith.constant 0 : i32
    %c0_i32_1 = arith.constant 0 : i32
    return %c0_i32, %arg0, %c0_i32_0 : i32, i32, i32
  }
  func.func @transform_2(%arg0: i32) -> (i32, i32, i32) {
    %c0_i32 = arith.constant 0 : i32
    %c0_i32_0 = arith.constant 0 : i32
    %c0_i32_1 = arith.constant 0 : i32
    return %arg0, %c0_i32, %c0_i32_0 : i32, i32, i32
  }
}

</mosaic_0001>

<llo_original>
// kernel: tpu_custom_call.1
$region0: #{tpu_custom_call.1}
  #allocation0 [shape = 'u32[]', space=smem, size = 0x4, offset = 0x4, fixed_abs, tag = 'smem constant byte address 0x4 - core index']
  #allocation1 [shape = 'u32[144,128]{1,0:T(1,128)}', space=vmem, size = 0x12000, scoped, tag = 'internal scratch']
  #allocation2 [shape = 's32[1]{0:T(128)}', space=smem, size = 0x200, scoped, tag = 'scratch operand']
  %s0 = inlined_call_operand.hbm [shape: f32[8,8,128], index: 0, kind: input, shape index: {}]
  %s1 = inlined_call_operand.hbm [shape: f32[8,8,128], index: 1, kind: output, shape index: {0}]
  %s2 = inlined_call_operand.hbm [shape: s32[1,1,128], index: 2, kind: output, shape index: {1}]
  %3 = xla_tuple %s1, %s2
  %s4 = sld [smem:[#allocation0]]
  $region34: #{tpu_custom_call.1} parent=0
    _
  %s6 = ssub.s32 1, %s4
  %s7 = scalar_select 0, %s6, %s4
  $region1: #{tpu_custom_call.1} parent=0
    #allocation3 [shape = 'u8[32768]{0}', space=vmem, size = 0x8000, scoped, tag = 'input window, operand 0, single buffered']
    #allocation4 [shape = 's32[1]{0}', space=sflag, size = 0x4, scoped, tag = 'scoped memory for tpu_custom_call.1']
    #allocation5 [shape = 's32[1]{0}', space=sflag, size = 0x4, scoped, tag = 'scoped memory for tpu_custom_call.1']
    #allocation6 [shape = 'u8[32768]{0}', space=vmem, size = 0x8000, scoped, tag = 'output window, operand 0, single buffered']
    #allocation7 [shape = 'u8[512]{0}', space=vmem, size = 0x400, scoped, tag = 'output window, operand 1, single buffered']
    #allocation8 [shape = 's32[1]{0}', space=sflag, size = 0x4, scoped, tag = 'scoped memory for tpu_custom_call.1']
    %8 = vsyncpa [#allocation4], 0
    %9 = vsyncpa [#allocation5], 0
    %10 = vsyncpa [#allocation8], 0
    // Predicated region
    $region2: #{tpu_custom_call.1} parent=1 // pred_check
      _
    $region3: #{tpu_custom_call.1} parent=1 // pred_check_branch
      %12 = sbr.rel (0) target = $region5
    $region4: #{tpu_custom_call.1} parent=1 // pred_region
      %s14 = ssub.s32 1024, 1024
      %15 = vsyncadd [#allocation4], %s14
      %s16 = sshll.u32 [#allocation3], 4
      %s17 = int_to_ptr.vmem [resolvable:$true] %s16
      %22 = dma.hbm_to_vmem [thread:$0]  %s0, 1024, %s17, [#allocation4], 128, 128, 8
    $region5: #{tpu_custom_call.1} parent=1 // pred_fallthru
      _
    // Predicated region
    $region6: #{tpu_custom_call.1} parent=1 // pred_check
      _
    $region7: #{tpu_custom_call.1} parent=1 // pred_check_branch
      %24 = sbr.rel (0) target = $region9
    $region8: #{tpu_custom_call.1} parent=1 // pred_region
      %25 = dma.done [#allocation4], 1024
    $region9: #{tpu_custom_call.1} parent=1 // pred_fallthru
      _
    %v26 = vld [vmem:[#allocation3] sm:$0xff]
    %v27 = vld [vmem:[#allocation3 + $0x8] sm:$0xff]
    %v28 = vld [vmem:[#allocation3 + $0x10] sm:$0xff]
    %v29 = vld [vmem:[#allocation3 + $0x18] sm:$0xff]
    %v30 = vld [vmem:[#allocation3 + $0x20] sm:$0xff]
    %v31 = vld [vmem:[#allocation3 + $0x28] sm:$0xff]
    %v32 = vld [vmem:[#allocation3 + $0x30] sm:$0xff]
    %v33 = vld [vmem:[#allocation3 + $0x38] sm:$0xff]
    %vm34 = vcmp.le.f32.partialorder %v26, 0.0
    %vm35 = vcmp.le.f32.partialorder %v27, 0.0
    %vm36 = vcmp.le.f32.partialorder %v28, 0.0
    %vm37 = vcmp.le.f32.partialorder %v29, 0.0
    %vm38 = vcmp.le.f32.partialorder %v30, 0.0
    %vm39 = vcmp.le.f32.partialorder %v31, 0.0
    %vm40 = vcmp.le.f32.partialorder %v32, 0.0
    %vm41 = vcmp.le.f32.partialorder %v33, 0.0
    %vm42 = vcmp.ge.f32.partialorder %v26, 3.1415927
    %vm43 = vcmp.ge.f32.partialorder %v27, 3.1415927
    %vm44 = vcmp.ge.f32.partialorder %v28, 3.1415927
    %vm45 = vcmp.ge.f32.partialorder %v29, 3.1415927
    %vm46 = vcmp.ge.f32.partialorder %v30, 3.1415927
    %vm47 = vcmp.ge.f32.partialorder %v31, 3.1415927
    %vm48 = vcmp.ge.f32.partialorder %v32, 3.1415927
    %vm49 = vcmp.ge.f32.partialorder %v33, 3.1415927
    %vm50 = vmor %vm34, %vm42
    %vm51 = vmor %vm35, %vm43
    %vm52 = vmor %vm36, %vm44
    %vm53 = vmor %vm37, %vm45
    %vm54 = vmor %vm38, %vm46
    %vm55 = vmor %vm39, %vm47
    %vm56 = vmor %vm40, %vm48
    %vm57 = vmor %vm41, %vm49
    %v58 = vsel %vm50, 1, 0
    %v59 = vsel %vm51, 1, 0
    %v60 = vsel %vm52, 1, 0
    %v61 = vsel %vm53, 1, 0
    %v62 = vsel %vm54, 1, 0
    %v63 = vsel %vm55, 1, 0
    %v64 = vsel %vm56, 1, 0
    %v65 = vsel %vm57, 1, 0
    %v66 = vcvt.s32.f32 %v58
    %v67 = vcvt.s32.f32 %v59
    %v68 = vcvt.s32.f32 %v60
    %v69 = vcvt.s32.f32 %v61
    %v70 = vcvt.s32.f32 %v62
    %v71 = vcvt.s32.f32 %v63
    %v72 = vcvt.s32.f32 %v64
    %v73 = vcvt.s32.f32 %v65
    %v74 = vmax.f32 %v66, %v70
    %v75 = vmax.f32 %v67, %v71
    %v76 = vmax.f32 %v68, %v72
    %v77 = vmax.f32 %v69, %v73
    %v78 = vmax.f32 %v74, %v75
    %v79 = vmax.f32 %v76, %v77
    %v80 = vmax.f32 %v78, %v79
    %v81 = vrot.slane %v80, 4
    %v82 = vmax.f32 %v80, %v81
    %v83 = vrot.slane %v82, 2
    %v84 = vmax.f32 %v82, %v83
    %v85 = vrot.slane %v84, 1
    %v86 = vmax.f32 %v84, %v85
    %v87 = vsub.f32 %v28, %v27
    %v88 = vsub.f32 %v29, %v28
    %v89 = vsub.f32 %v30, %v29
    %v90 = vsub.f32 %v31, %v30
    %v91 = vsub.f32 %v32, %v31
    %v92 = vsub.f32 %v33, %v32
    %vm93 = vcmp.le.f32.partialorder %v87, 0.0
    %vm94 = vcmp.le.f32.partialorder %v88, 0.0
    %vm95 = vcmp.le.f32.partialorder %v89, 0.0
    %vm96 = vcmp.le.f32.partialorder %v90, 0.0
    %vm97 = vcmp.le.f32.partialorder %v91, 0.0
    %vm98 = vcmp.le.f32.partialorder %v92, 0.0
    %v99 = vsel %vm93, 1, 0
    %v100 = vsel %vm94, 1, 0
    %v101 = vsel %vm95, 1, 0
    %v102 = vsel %vm96, 1, 0
    %v103 = vsel %vm97, 1, 0
    %v104 = vsel %vm98, 1, 0
    %v105 = vcvt.s32.f32 %v99
    %v106 = vcvt.s32.f32 %v100
    %v107 = vcvt.s32.f32 %v101
    %v108 = vcvt.s32.f32 %v102
    %v109 = vcvt.s32.f32 %v103
    %v110 = vcvt.s32.f32 %v104
    %v111 = vmax.f32 %v105, %v109
    %v112 = vmax.f32 %v106, %v110
    %v113 = vmax.f32 %v111, %v112
    %v114 = vmax.f32 %v107, %v108
    %v115 = vmax.f32 %v113, %v114
    %v116 = vrot.slane %v115, 4
    %v117 = vmax.f32 %v115, %v116
    %v118 = vrot.slane %v117, 2
    %v119 = vmax.f32 %v117, %v118
    %v120 = vrot.slane %v119, 1
    %v121 = vmax.f32 %v119, %v120
    %v122 = vmax.f32 %v86, %v121
    %vm123 = vcmp.gt.f32.partialorder %v122, 0.0
    %v124 = vsel %vm123, 1, 0
    %125 = vst [vmem:[#allocation7] sm:$0x1] %v124
    %126 = vst [vmem:[#allocation6] sm:$0xff] %v26
    %s127 = scalar_lea.vmem [#allocation3], 8
    %v128 = vld [vmem:[%s127] sm:$0xff]
    %s129 = scalar_lea.vmem [#allocation3], 16
    %v130 = vld [vmem:[%s129] sm:$0xff]
    %v131 = vsub.f32 %v130, %v128
    %v132 = vsub.f32 0.07853982, %v131
    %v133 = vmax.f32 %v132, 0.0
    %v134 = vmul.f32 %v133, 0.5
    %v135 = vsub.f32 %v128, %v134
    %v136 = vmax.f32 %v135, 0.07853982
    %v137 = vmin.f32 %v136, 3.063053
    %s138 = scalar_lea.vmem [#allocation6], 8
    %139 = vst [vmem:[%s138] sm:$0xff] %v137
    %v140 = vadd.f32 %v130, %v134
    %s141 = scalar_lea.vmem [#allocation3], 24
    %v142 = vld [vmem:[%s141] sm:$0xff]
    %v143 = vsub.f32 %v142, %v140
    %v144 = vsub.f32 0.07853982, %v143
    %v145 = vmax.f32 %v144, 0.0
    %v146 = vmul.f32 %v145, 0.5
    %v147 = vsub.f32 %v140, %v146
    %v148 = vmax.f32 %v147, 0.07853982
    %v149 = vmin.f32 %v148, 3.063053
    %s150 = scalar_lea.vmem [#allocation6], 16
    %151 = vst [vmem:[%s150] sm:$0xff] %v149
    %v152 = vsub.f32 %v149, %v137
    %vm153 = vcmp.ge.f32.partialorder %v152, 0.07853982
    %v154 = vadd.f32 %v142, %v146
    %s155 = scalar_lea.vmem [#allocation3], 32
    %v156 = vld [vmem:[%s155] sm:$0xff]
    %v157 = vsub.f32 %v156, %v154
    %v158 = vsub.f32 0.07853982, %v157
    %v159 = vmax.f32 %v158, 0.0
    %v160 = vmul.f32 %v159, 0.5
    %v161 = vsub.f32 %v154, %v160
    %v162 = vmax.f32 %v161, 0.07853982
    %v163 = vmin.f32 %v162, 3.063053
    %s164 = scalar_lea.vmem [#allocation6], 24
    %165 = vst [vmem:[%s164] sm:$0xff] %v163
    %v166 = vsub.f32 %v163, %v149
    %vm167 = vcmp.ge.f32.partialorder %v166, 0.07853982
    %vm168 = vmand %vm153, %vm167
    %v169 = vadd.f32 %v156, %v160
    %s170 = scalar_lea.vmem [#allocation3], 40
    %v171 = vld [vmem:[%s170] sm:$0xff]
    %v172 = vsub.f32 %v171, %v169
    %v173 = vsub.f32 0.07853982, %v172
    %v174 = vmax.f32 %v173, 0.0
    %v175 = vmul.f32 %v174, 0.5
    %v176 = vsub.f32 %v169, %v175
    %v177 = vmax.f32 %v176, 0.07853982
    %v178 = vmin.f32 %v177, 3.063053
    %s179 = scalar_lea.vmem [#allocation6], 32
    %180 = vst [vmem:[%s179] sm:$0xff] %v178
    %v181 = vsub.f32 %v178, %v163
    %vm182 = vcmp.ge.f32.partialorder %v181, 0.07853982
    %vm183 = vmand %vm168, %vm182
    %v184 = vadd.f32 %v171, %v175
    %s185 = scalar_lea.vmem [#allocation3], 48
    %v186 = vld [vmem:[%s185] sm:$0xff]
    %v187 = vsub.f32 %v186, %v184
    %v188 = vsub.f32 0.07853982, %v187
    %v189 = vmax.f32 %v188, 0.0
    %v190 = vmul.f32 %v189, 0.5
    %v191 = vsub.f32 %v184, %v190
    %v192 = vmax.f32 %v191, 0.07853982
    %v193 = vmin.f32 %v192, 3.063053
    %s194 = scalar_lea.vmem [#allocation6], 40
    %195 = vst [vmem:[%s194] sm:$0xff] %v193
    %v196 = vsub.f32 %v193, %v178
    %vm197 = vcmp.ge.f32.partialorder %v196, 0.07853982
    %vm198 = vmand %vm183, %vm197
    %v199 = vadd.f32 %v186, %v190
    %s200 = scalar_lea.vmem [#allocation3], 56
    %v201 = vld [vmem:[%s200] sm:$0xff]
    %v202 = vsub.f32 %v201, %v199
    %v203 = vsub.f32 0.07853982, %v202
    %v204 = vmax.f32 %v203, 0.0
    %v205 = vmul.f32 %v204, 0.5
    %v206 = vsub.f32 %v199, %v205
    %v207 = vmax.f32 %v206, 0.07853982
    %v208 = vmin.f32 %v207, 3.063053
    %s209 = scalar_lea.vmem [#allocation6], 48
    %210 = vst [vmem:[%s209] sm:$0xff] %v208
    %v211 = vsub.f32 %v208, %v193
    %vm212 = vcmp.ge.f32.partialorder %v211, 0.07853982
    %vm213 = vmand %vm198, %vm212
    %v214 = vadd.f32 %v201, %v205
    %v215 = vmax.f32 %v214, 0.07853982
    %v216 = vmin.f32 %v215, 3.063053
    %s217 = scalar_lea.vmem [#allocation6], 56
    %218 = vst [vmem:[%s217] sm:$0xff] %v216
    %v219 = vsub.f32 %v216, %v208
    %vm220 = vcmp.ge.f32.partialorder %v219, 0.07853982
    %vm221 = vmand %vm213, %vm220
    %v222 = vsel %vm221, 1.0, 0.0
    %223 = vmin.xlane.f32.xlu0 %v222
    %v224 = vpop.xlane.xlu0 %223
    %v225 = vrot.slane %v224, 4
    %v226 = vmin.f32 %v224, %v225
    %v227 = vrot.slane %v226, 2
    %v228 = vmin.f32 %v226, %v227
    %v229 = vrot.slane %v228, 1
    %v230 = vmin.f32 %v228, %v229
    %s231 = vtos %v230
    %p232 = scmp.gt.f32.partialorder %s231, 0.0
    %s233 = scalar_select %p232, 1, 0
    %s234 = scalar_lea.smem [#allocation2], 0
    %235 = sst [smem:[%s234]] %s233
    %s236 = sld [smem:[#allocation2]]
    %p237 = scmp.eq.s32.totalorder %s236, 0
    // Predicated region
    $region10: #{tpu_custom_call.1} parent=1 // pred_check
      %p238 = pneg %p237
    $region11: #{tpu_custom_call.1} parent=1 // pred_check_branch
      %240 = sbr.rel (%p238) target = $region13
    $region12: #{tpu_custom_call.1} parent=1 // pred_region
      %v241 = vld [vmem:[%s138] sm:$0xff]
      %v242 = vld [vmem:[%s150] sm:$0xff]
      %v243 = vsub.f32 %v242, %v241
      %v244 = vsub.f32 0.07853982, %v243
      %v245 = vmax.f32 %v244, 0.0
      %v246 = vmul.f32 %v245, 0.5
      %v247 = vsub.f32 %v241, %v246
      %v248 = vmax.f32 %v247, 0.07853982
      %v249 = vmin.f32 %v248, 3.063053
      %250 = vst [vmem:[%s138] sm:$0xff] %v249
      %v251 = vadd.f32 %v242, %v246
      %v252 = vld [vmem:[%s164] sm:$0xff]
      %v253 = vsub.f32 %v252, %v251
      %v254 = vsub.f32 0.07853982, %v253
      %v255 = vmax.f32 %v254, 0.0
      %v256 = vmul.f32 %v255, 0.5
      %v257 = vsub.f32 %v251, %v256
      %v258 = vmax.f32 %v257, 0.07853982
      %v259 = vmin.f32 %v258, 3.063053
      %260 = vst [vmem:[%s150] sm:$0xff] %v259
      %v261 = vsub.f32 %v259, %v249
      %vm262 = vcmp.ge.f32.partialorder %v261, 0.07853982
      %v263 = vadd.f32 %v252, %v256
      %v264 = vld [vmem:[%s179] sm:$0xff]
      %v265 = vsub.f32 %v264, %v263
      %v266 = vsub.f32 0.07853982, %v265
      %v267 = vmax.f32 %v266, 0.0
      %v268 = vmul.f32 %v267, 0.5
      %v269 = vsub.f32 %v263, %v268
      %v270 = vmax.f32 %v269, 0.07853982
      %v271 = vmin.f32 %v270, 3.063053
      %272 = vst [vmem:[%s164] sm:$0xff] %v271
      %v273 = vsub.f32 %v271, %v259
      %vm274 = vcmp.ge.f32.partialorder %v273, 0.07853982
      %vm275 = vmand %vm262, %vm274
      %v276 = vadd.f32 %v264, %v268
      %v277 = vld [vmem:[%s194] sm:$0xff]
      %v278 = vsub.f32 %v277, %v276
      %v279 = vsub.f32 0.07853982, %v278
      %v280 = vmax.f32 %v279, 0.0
      %v281 = vmul.f32 %v280, 0.5
      %v282 = vsub.f32 %v276, %v281
      %v283 = vmax.f32 %v282, 0.07853982
      %v284 = vmin.f32 %v283, 3.063053
      %285 = vst [vmem:[%s179] sm:$0xff] %v284
      %v286 = vsub.f32 %v284, %v271
      %vm287 = vcmp.ge.f32.partialorder %v286, 0.07853982
      %vm288 = vmand %vm275, %vm287
      %v289 = vadd.f32 %v277, %v281
      %v290 = vld [vmem:[%s209] sm:$0xff]
      %v291 = vsub.f32 %v290, %v289
      %v292 = vsub.f32 0.07853982, %v291
      %v293 = vmax.f32 %v292, 0.0
      %v294 = vmul.f32 %v293, 0.5
      %v295 = vsub.f32 %v289, %v294
      %v296 = vmax.f32 %v295, 0.07853982
      %v297 = vmin.f32 %v296, 3.063053
      %298 = vst [vmem:[%s194] sm:$0xff] %v297
      %v299 = vsub.f32 %v297, %v284
      %vm300 = vcmp.ge.f32.partialorder %v299, 0.07853982
      %vm301 = vmand %vm288, %vm300
      %v302 = vadd.f32 %v290, %v294
      %v303 = vld [vmem:[%s217] sm:$0xff]
      %v304 = vsub.f32 %v303, %v302
      %v305 = vsub.f32 0.07853982, %v304
      %v306 = vmax.f32 %v305, 0.0
      %v307 = vmul.f32 %v306, 0.5
      %v308 = vsub.f32 %v302, %v307
      %v309 = vmax.f32 %v308, 0.07853982
      %v310 = vmin.f32 %v309, 3.063053
      %311 = vst [vmem:[%s209] sm:$0xff] %v310
      %v312 = vsub.f32 %v310, %v297
      %vm313 = vcmp.ge.f32.partialorder %v312, 0.07853982
      %vm314 = vmand %vm301, %vm313
      %v315 = vadd.f32 %v303, %v307
      %v316 = vmax.f32 %v315, 0.07853982
      %v317 = vmin.f32 %v316, 3.063053
      %318 = vst [vmem:[%s217] sm:$0xff] %v317
      %v319 = vsub.f32 %v317, %v310
      %vm320 = vcmp.ge.f32.partialorder %v319, 0.07853982
      %vm321 = vmand %vm314, %vm320
      %v322 = vsel %vm321, 1.0, 0.0
      %323 = vmin.xlane.f32.xlu0 %v322
      %v324 = vpop.xlane.xlu0 %323
      %v325 = vrot.slane %v324, 4
      %v326 = vmin.f32 %v324, %v325
      %v327 = vrot.slane %v326, 2
      %v328 = vmin.f32 %v326, %v327
      %v329 = vrot.slane %v328, 1
      %v330 = vmin.f32 %v328, %v329
      %s331 = vtos %v330
      %p332 = scmp.gt.f32.partialorder %s331, 0.0
      %s333 = scalar_select %p332, 1, 0
      %334 = sst [smem:[%s234]] %s333
    $region13: #{tpu_custom_call.1} parent=1 // pred_fallthru
      _
    %s335 = sld [smem:[#allocation2]]
    %p336 = scmp.eq.s32.totalorder %s335, 0
    // Predicated region
    $region14: #{tpu_custom_call.1} parent=1 // pred_check
      %p337 = pneg %p336
    $region15: #{tpu_custom_call.1} parent=1 // pred_check_branch
      %339 = sbr.rel (%p337) target = $region17
    $region16: #{tpu_custom_call.1} parent=1 // pred_region
      %v340 = vld [vmem:[%s138] sm:$0xff]
      %v341 = vld [vmem:[%s150] sm:$0xff]
      %v342 = vsub.f32 %v341, %v340
      %v343 = vsub.f32 0.07853982, %v342
      %v344 = vmax.f32 %v343, 0.0
      %v345 = vmul.f32 %v344, 0.5
      %v346 = vsub.f32 %v340, %v345
      %v347 = vmax.f32 %v346, 0.07853982
      %v348 = vmin.f32 %v347, 3.063053
      %349 = vst [vmem:[%s138] sm:$0xff] %v348
      %v350 = vadd.f32 %v341, %v345
      %v351 = vld [vmem:[%s164] sm:$0xff]
      %v352 = vsub.f32 %v351, %v350
      %v353 = vsub.f32 0.07853982, %v352
      %v354 = vmax.f32 %v353, 0.0
      %v355 = vmul.f32 %v354, 0.5
      %v356 = vsub.f32 %v350, %v355
      %v357 = vmax.f32 %v356, 0.07853982
      %v358 = vmin.f32 %v357, 3.063053
      %359 = vst [vmem:[%s150] sm:$0xff] %v358
      %v360 = vadd.f32 %v351, %v355
      %v361 = vld [vmem:[%s179] sm:$0xff]
      %v362 = vsub.f32 %v361, %v360
      %v363 = vsub.f32 0.07853982, %v362
      %v364 = vmax.f32 %v363, 0.0
      %v365 = vmul.f32 %v364, 0.5
      %v366 = vsub.f32 %v360, %v365
      %v367 = vmax.f32 %v366, 0.07853982
      %v368 = vmin.f32 %v367, 3.063053
      %369 = vst [vmem:[%s164] sm:$0xff] %v368
      %v370 = vadd.f32 %v361, %v365
      %v371 = vld [vmem:[%s194] sm:$0xff]
      %v372 = vsub.f32 %v371, %v370
      %v373 = vsub.f32 0.07853982, %v372
      %v374 = vmax.f32 %v373, 0.0
      %v375 = vmul.f32 %v374, 0.5
      %v376 = vsub.f32 %v370, %v375
      %v377 = vmax.f32 %v376, 0.07853982
      %v378 = vmin.f32 %v377, 3.063053
      %379 = vst [vmem:[%s179] sm:$0xff] %v378
      %v380 = vadd.f32 %v371, %v375
      %v381 = vld [vmem:[%s209] sm:$0xff]
      %v382 = vsub.f32 %v381, %v380
      %v383 = vsub.f32 0.07853982, %v382
      %v384 = vmax.f32 %v383, 0.0
      %v385 = vmul.f32 %v384, 0.5
      %v386 = vsub.f32 %v380, %v385
      %v387 = vmax.f32 %v386, 0.07853982
      %v388 = vmin.f32 %v387, 3.063053
      %389 = vst [vmem:[%s194] sm:$0xff] %v388
      %v390 = vadd.f32 %v381, %v385
      %v391 = vld [vmem:[%s217] sm:$0xff]
      %v392 = vsub.f32 %v391, %v390
      %v393 = vsub.f32 0.07853982, %v392
      %v394 = vmax.f32 %v393, 0.0
      %v395 = vmul.f32 %v394, 0.5
      %v396 = vsub.f32 %v390, %v395
      %v397 = vmax.f32 %v396, 0.07853982
      %v398 = vmin.f32 %v397, 3.063053
      %399 = vst [vmem:[%s209] sm:$0xff] %v398
      %v400 = vadd.f32 %v391, %v395
      %v401 = vmax.f32 %v400, 0.07853982
      %v402 = vmin.f32 %v401, 3.063053
      %403 = vst [vmem:[%s217] sm:$0xff] %v402
    $region17: #{tpu_custom_call.1} parent=1 // pred_fallthru
      _
    // Predicated region
    $region18: #{tpu_custom_call.1} parent=1 // pred_check
      _
    $region19: #{tpu_custom_call.1} parent=1 // pred_check_branch
      %405 = sbr.rel (0) target = $region21
    $region20: #{tpu_custom_call.1} parent=1 // pred_region
      %s407 = ssub.s32 1024, 1024
      %408 = vsyncadd [#allocation5], %s407
      %s409 = sshll.u32 [#allocation6], 4
      %s410 = int_to_ptr.vmem [resolvable:$true] %s409
      %415 = dma.vmem_to_hbm [thread:$0]  %s410, 1024, %s1, [#allocation5], 128, 128, 8
    $region21: #{tpu_custom_call.1} parent=1 // pred_fallthru
      _
    // Predicated region
    $region22: #{tpu_custom_call.1} parent=1 // pred_check
      _
    $region23: #{tpu_custom_call.1} parent=1 // pred_check_branch
      %417 = sbr.rel (0) target = $region25
    $region24: #{tpu_custom_call.1} parent=1 // pred_region
      %s419 = ssub.s32 16, 16
      %420 = vsyncadd [#allocation8], %s419
      %s422 = sshll.u32 [#allocation7], 4
      %s423 = int_to_ptr.vmem [resolvable:$true] %s422
      %425 = dma.vmem_to_hbm [thread:$0]  %s423, 16, %s2, [#allocation8]
    $region25: #{tpu_custom_call.1} parent=1 // pred_fallthru
      _
    // Predicated region
    $region26: #{tpu_custom_call.1} parent=1 // pred_check
      _
    $region27: #{tpu_custom_call.1} parent=1 // pred_check_branch
      %427 = sbr.rel (0) target = $region29
    $region28: #{tpu_custom_call.1} parent=1 // pred_region
      %428 = dma.done [#allocation5], 1024
    $region29: #{tpu_custom_call.1} parent=1 // pred_fallthru
      _
    // Predicated region
    $region30: #{tpu_custom_call.1} parent=1 // pred_check
      _
    $region31: #{tpu_custom_call.1} parent=1 // pred_check_branch
      %430 = sbr.rel (0) target = $region33
    $region32: #{tpu_custom_call.1} parent=1 // pred_region
      %431 = dma.done [#allocation8], 16
    $region33: #{tpu_custom_call.1} parent=1 // pred_fallthru
      _
    %432 = vsyncpa [#allocation4], 1
    %433 = vsyncpa [#allocation5], 1
    %434 = vsyncpa [#allocation8], 1

</llo_original>
